<compile_context>
chip_gen: v7x
topology: tpu7x:2x2x1
jax: 0.10.0
libtpu: 0.0.40
codegen_flags: <defaults>
</compile_context>

<pallas_src>
import jax
import jax.numpy as jnp
from jax import lax
from jax.experimental import pallas as pl
from jax.experimental.pallas import tpu as pltpu

EPS = 1e-5
LANE = 128  # lane width; padded output column count


def dqn_kernel(x_ref, w1_ref, w2_ref, w3_ref, vec_ref, o_ref):
    """Full forward pass in one kernel; every operand is a full-array VMEM block."""
    h1 = w1_ref.shape[1]
    h2 = w2_ref.shape[1]

    # Packed per-feature row vectors: rows 0..4 = g1, be1, g2, be2, b3 (zero-padded).
    g1 = vec_ref[0:1, :h1]
    be1 = vec_ref[1:2, :h1]
    g2 = vec_ref[2:3, :h2]
    be2 = vec_ref[3:4, :h2]
    b3 = vec_ref[4:5, :]          # (1, LANE), already zero-padded past out_dim

    def bn_relu(h, g, be):
        # BatchNorm1d, training-mode semantics: batch statistics, biased variance.
        mu = jnp.mean(h, axis=0, keepdims=True)
        d = h - mu
        var = jnp.mean(d * d, axis=0, keepdims=True)
        hn = d * (g * lax.rsqrt(var + EPS)) + be   # gamma folded into the scale
        return jnp.maximum(hn, 0.0)

    # Layer 1 (pre-BN bias dropped: exactly cancelled by the BN mean subtraction).
    h = jnp.dot(x_ref[...], w1_ref[...], preferred_element_type=jnp.float32)
    h = bn_relu(h, g1, be1)
    # Layer 2.
    h = jnp.dot(h.astype(jnp.bfloat16), w2_ref[...], preferred_element_type=jnp.float32)
    h = bn_relu(h, g2, be2)
    # Output layer (bias kept; output lane-padded to LANE columns).
    y = jnp.dot(h.astype(jnp.bfloat16), w3_ref[...], preferred_element_type=jnp.float32) + b3

    # torch.linalg.norm(y, ord=1) for 2-D y == max column abs-sum (matrix 1-norm).
    # Zero-padded columns contribute 0 and cannot change the max.
    col_abs = jnp.sum(jnp.abs(y), axis=0, keepdims=True)        # (1, LANE)
    l1 = jnp.max(col_abs, axis=1, keepdims=True)                # (1, 1)
    l1 = jnp.maximum(l1, 1e-30)                                 # guard all-zero output
    o_ref[...] = y * pl.reciprocal(l1, approx=True)


def pack_params(params, out_dim):
    """One-time conversion from PyTorch-layout params to the kernel's packed layout."""
    (w1, b1, g1, be1, w2, b2, g2, be2, w3, b3) = params
    del b1, b2  # cancelled by training-mode BatchNorm mean subtraction -> never loaded
    h1 = w1.shape[1]
    h2 = w2.shape[1]
    # Lane-dense output: zero-pad w3 / b3 to LANE output columns.
    w3p = jnp.zeros((w3.shape[0], LANE), jnp.float32).at[:, :out_dim].set(w3)
    vec = (jnp.zeros((8, LANE), jnp.float32)
           .at[0, :h1].set(g1.reshape(-1))
           .at[1, :h1].set(be1.reshape(-1))
           .at[2, :h2].set(g2.reshape(-1))
           .at[3, :h2].set(be2.reshape(-1))
           .at[4, :out_dim].set(b3.reshape(-1)))
    return (w1.astype(jnp.bfloat16),
            w2.astype(jnp.bfloat16),
            w3p.astype(jnp.bfloat16),
            vec)


def dqn_forward(x, packed, out_dim):
    w1, w2, w3p, vec = packed
    batch = x.shape[0]
    vmem = pl.BlockSpec(memory_space=pltpu.MemorySpace.VMEM)
    y = pl.pallas_call(
        dqn_kernel,
        out_shape=jax.ShapeDtypeStruct((batch, LANE), jnp.float32),
        in_specs=[vmem] * 5,
        out_specs=vmem,
    )(x.astype(jnp.bfloat16), w1, w2, w3p, vec)
    return y[:, :out_dim]


def init_params(key, dims):
    """dims = [input_dim, h1, h2, output_dim].  PyTorch-layout params.

    Linear weights are stored pre-transposed as (in, out); biases / BN params as (1, dim).
    BN gamma/beta are slightly perturbed from the PyTorch defaults (1, 0) so the affine
    path is actually exercised by the self-test.
    """
    params = []
    n_layers = len(dims) - 1
    keys = jax.random.split(key, 4 * n_layers)
    for i in range(n_layers):
        fan_in, fan_out = dims[i], dims[i + 1]
        bound = 1.0 / jnp.sqrt(fan_in)
        w = jax.random.uniform(keys[4 * i], (fan_in, fan_out), jnp.float32, -bound, bound)
        b = jax.random.uniform(keys[4 * i + 1], (1, fan_out), jnp.float32, -bound, bound)
        params += [w, b]
        if i < n_layers - 1:
            g = 1.0 + 0.1 * jax.random.normal(keys[4 * i + 2], (1, fan_out), jnp.float32)
            be = 0.1 * jax.random.normal(keys[4 * i + 3], (1, fan_out), jnp.float32)
            params += [g, be]
    return tuple(params)


def dqn_reference(x, params):
    """Pure-JAX reference with the original module's structure (biases kept, exact divide).

    Matmuls use the same bf16-in / f32-accumulate numerics as the kernel so the comparison
    is tight; BN / normalization math is f32.
    """
    (w1, b1, g1, be1, w2, b2, g2, be2, w3, b3) = params

    def dot_bf16(a, b):
        return jnp.dot(a.astype(jnp.bfloat16), b.astype(jnp.bfloat16),
                       preferred_element_type=jnp.float32)

    def bn_relu(h, g, be):
        mu = jnp.mean(h, axis=0, keepdims=True)
        var = jnp.mean((h - mu) ** 2, axis=0, keepdims=True)
        return jnp.maximum((h - mu) / jnp.sqrt(var + EPS) * g + be, 0.0)

    h = bn_relu(dot_bf16(x, w1) + b1, g1, be1)
    h = bn_relu(dot_bf16(h, w2) + b2, g2, be2)
    y = dot_bf16(h, w3) + b3
    return y / jnp.max(jnp.sum(jnp.abs(y), axis=0))


if __name__ == "__main__":
    key = jax.random.PRNGKey(0)
    k_x, k_p = jax.random.split(key)

    batch = 8
    input_dim, hidden1, hidden2, output_dim = 16, 32, 32, 8
    dims = [input_dim, hidden1, hidden2, output_dim]

    x = jax.random.normal(k_x, (batch, input_dim), jnp.float32)
    params = init_params(k_p, dims)
    packed = pack_params(params, output_dim)

    out = dqn_forward(x, packed, output_dim)
    out = jax.block_until_ready(out)

    ref = dqn_reference(x, params)
    assert out.shape == (batch, output_dim)
    # Tolerance covers the approx EUP reciprocal and bf16 / reassociation rounding.
    assert jnp.allclose(out, ref, atol=2e-3, rtol=2e-2), "mismatch vs JAX reference"

    print("KERNEL_OK")
</pallas_src>

<mosaic_0001>
module attributes {stable_mosaic.version = 11 : i64} {
  func.func @dqn_kernel(%arg0: memref<8x16xbf16, #tpu.memory_space<vmem>>, %arg1: memref<16x32xbf16, #tpu.memory_space<vmem>>, %arg2: memref<32x32xbf16, #tpu.memory_space<vmem>>, %arg3: memref<32x128xbf16, #tpu.memory_space<vmem>>, %arg4: memref<8x128xf32, #tpu.memory_space<vmem>>, %arg5: memref<8x128xf32, #tpu.memory_space<vmem>>) attributes {dimension_semantics = [], scalar_prefetch = 0 : i64, scratch_operands = 0 : i64, tpu.core_type = #tpu.core_type<tc>} {
    %c0 = arith.constant 0 : index
    %c0_0 = arith.constant 0 : index
    %0 = vector.load %arg4[%c0, %c0_0] : memref<8x128xf32, #tpu.memory_space<vmem>>, vector<1x32xf32>
    %c1 = arith.constant 1 : index
    %c0_1 = arith.constant 0 : index
    %1 = vector.load %arg4[%c1, %c0_1] : memref<8x128xf32, #tpu.memory_space<vmem>>, vector<1x32xf32>
    %c2 = arith.constant 2 : index
    %c0_2 = arith.constant 0 : index
    %2 = vector.load %arg4[%c2, %c0_2] : memref<8x128xf32, #tpu.memory_space<vmem>>, vector<1x32xf32>
    %c3 = arith.constant 3 : index
    %c0_3 = arith.constant 0 : index
    %3 = vector.load %arg4[%c3, %c0_3] : memref<8x128xf32, #tpu.memory_space<vmem>>, vector<1x32xf32>
    %c4 = arith.constant 4 : index
    %c0_4 = arith.constant 0 : index
    %4 = vector.load %arg4[%c4, %c0_4] : memref<8x128xf32, #tpu.memory_space<vmem>>, vector<1x128xf32>
    %c0_5 = arith.constant 0 : index
    %c0_6 = arith.constant 0 : index
    %5 = vector.load %arg0[%c0_5, %c0_6] : memref<8x16xbf16, #tpu.memory_space<vmem>>, vector<8x16xbf16>
    %c0_7 = arith.constant 0 : index
    %c0_8 = arith.constant 0 : index
    %6 = vector.load %arg1[%c0_7, %c0_8] : memref<16x32xbf16, #tpu.memory_space<vmem>>, vector<16x32xbf16>
    %cst = arith.constant dense<0.000000e+00> : vector<8x32xf32>
    %7 = tpu.matmul %5, %6, %cst {dimension_numbers = #tpu.dot_dimension_numbers<[1], [0], [0], [1], [0, 0, 1, 1], [], []>} : vector<8x16xbf16>, vector<16x32xbf16>, vector<8x32xf32> -> vector<8x32xf32>
    %cst_9 = arith.constant dense<0.000000e+00> : vector<32xf32>
    %8 = vector.multi_reduction <add>, %7, %cst_9 [0] : vector<8x32xf32> to vector<32xf32>
    %9 = vector.shape_cast %8 : vector<32xf32> to vector<1x32xf32>
    %cst_10 = arith.constant 8.000000e+00 : f32
    %10 = vector.broadcast %cst_10 : f32 to vector<1x32xf32>
    %11 = arith.divf %9, %10 : vector<1x32xf32>
    %12 = vector.broadcast %11 : vector<1x32xf32> to vector<8x32xf32>
    %13 = arith.subf %7, %12 : vector<8x32xf32>
    %14 = arith.mulf %13, %13 : vector<8x32xf32>
    %cst_11 = arith.constant dense<0.000000e+00> : vector<32xf32>
    %15 = vector.multi_reduction <add>, %14, %cst_11 [0] : vector<8x32xf32> to vector<32xf32>
    %16 = vector.shape_cast %15 : vector<32xf32> to vector<1x32xf32>
    %cst_12 = arith.constant 8.000000e+00 : f32
    %17 = vector.broadcast %cst_12 : f32 to vector<1x32xf32>
    %18 = arith.divf %16, %17 : vector<1x32xf32>
    %cst_13 = arith.constant 9.99999974E-6 : f32
    %19 = vector.broadcast %cst_13 : f32 to vector<1x32xf32>
    %20 = arith.addf %18, %19 : vector<1x32xf32>
    %21 = math.rsqrt %20 : vector<1x32xf32>
    %22 = arith.mulf %0, %21 : vector<1x32xf32>
    %23 = vector.broadcast %22 : vector<1x32xf32> to vector<8x32xf32>
    %24 = arith.mulf %13, %23 : vector<8x32xf32>
    %25 = vector.broadcast %1 : vector<1x32xf32> to vector<8x32xf32>
    %26 = arith.addf %24, %25 : vector<8x32xf32>
    %cst_14 = arith.constant 0.000000e+00 : f32
    %27 = vector.broadcast %cst_14 : f32 to vector<8x32xf32>
    %28 = arith.maximumf %26, %27 : vector<8x32xf32>
    %29 = arith.truncf %28 : vector<8x32xf32> to vector<8x32xbf16>
    %c0_15 = arith.constant 0 : index
    %c0_16 = arith.constant 0 : index
    %30 = vector.load %arg2[%c0_15, %c0_16] : memref<32x32xbf16, #tpu.memory_space<vmem>>, vector<32x32xbf16>
    %cst_17 = arith.constant dense<0.000000e+00> : vector<8x32xf32>
    %31 = tpu.matmul %29, %30, %cst_17 {dimension_numbers = #tpu.dot_dimension_numbers<[1], [0], [0], [1], [0, 0, 1, 1], [], []>} : vector<8x32xbf16>, vector<32x32xbf16>, vector<8x32xf32> -> vector<8x32xf32>
    %cst_18 = arith.constant dense<0.000000e+00> : vector<32xf32>
    %32 = vector.multi_reduction <add>, %31, %cst_18 [0] : vector<8x32xf32> to vector<32xf32>
    %33 = vector.shape_cast %32 : vector<32xf32> to vector<1x32xf32>
    %cst_19 = arith.constant 8.000000e+00 : f32
    %34 = vector.broadcast %cst_19 : f32 to vector<1x32xf32>
    %35 = arith.divf %33, %34 : vector<1x32xf32>
    %36 = vector.broadcast %35 : vector<1x32xf32> to vector<8x32xf32>
    %37 = arith.subf %31, %36 : vector<8x32xf32>
    %38 = arith.mulf %37, %37 : vector<8x32xf32>
    %cst_20 = arith.constant dense<0.000000e+00> : vector<32xf32>
    %39 = vector.multi_reduction <add>, %38, %cst_20 [0] : vector<8x32xf32> to vector<32xf32>
    %40 = vector.shape_cast %39 : vector<32xf32> to vector<1x32xf32>
    %cst_21 = arith.constant 8.000000e+00 : f32
    %41 = vector.broadcast %cst_21 : f32 to vector<1x32xf32>
    %42 = arith.divf %40, %41 : vector<1x32xf32>
    %cst_22 = arith.constant 9.99999974E-6 : f32
    %43 = vector.broadcast %cst_22 : f32 to vector<1x32xf32>
    %44 = arith.addf %42, %43 : vector<1x32xf32>
    %45 = math.rsqrt %44 : vector<1x32xf32>
    %46 = arith.mulf %2, %45 : vector<1x32xf32>
    %47 = vector.broadcast %46 : vector<1x32xf32> to vector<8x32xf32>
    %48 = arith.mulf %37, %47 : vector<8x32xf32>
    %49 = vector.broadcast %3 : vector<1x32xf32> to vector<8x32xf32>
    %50 = arith.addf %48, %49 : vector<8x32xf32>
    %cst_23 = arith.constant 0.000000e+00 : f32
    %51 = vector.broadcast %cst_23 : f32 to vector<8x32xf32>
    %52 = arith.maximumf %50, %51 : vector<8x32xf32>
    %53 = arith.truncf %52 : vector<8x32xf32> to vector<8x32xbf16>
    %c0_24 = arith.constant 0 : index
    %c0_25 = arith.constant 0 : index
    %54 = vector.load %arg3[%c0_24, %c0_25] : memref<32x128xbf16, #tpu.memory_space<vmem>>, vector<32x128xbf16>
    %cst_26 = arith.constant dense<0.000000e+00> : vector<8x128xf32>
    %55 = tpu.matmul %53, %54, %cst_26 {dimension_numbers = #tpu.dot_dimension_numbers<[1], [0], [0], [1], [0, 0, 1, 1], [], []>} : vector<8x32xbf16>, vector<32x128xbf16>, vector<8x128xf32> -> vector<8x128xf32>
    %56 = vector.broadcast %4 : vector<1x128xf32> to vector<8x128xf32>
    %57 = arith.addf %55, %56 : vector<8x128xf32>
    %58 = math.absf %57 : vector<8x128xf32>
    %cst_27 = arith.constant dense<0.000000e+00> : vector<128xf32>
    %59 = vector.multi_reduction <add>, %58, %cst_27 [0] : vector<8x128xf32> to vector<128xf32>
    %60 = vector.shape_cast %59 : vector<128xf32> to vector<1x128xf32>
    %cst_28 = arith.constant dense<0xFF800000> : vector<1xf32>
    %61 = vector.multi_reduction <maximumf>, %60, %cst_28 [1] : vector<1x128xf32> to vector<1xf32>
    %62 = vector.shape_cast %61 : vector<1xf32> to vector<1x1xf32>
    %cst_29 = arith.constant 1.000000e-30 : f32
    %63 = vector.broadcast %cst_29 : f32 to vector<1x1xf32>
    %64 = arith.maximumf %62, %63 : vector<1x1xf32>
    %65 = tpu.reciprocal %64 {approx = true} : vector<1x1xf32> -> vector<1x1xf32>
    %66 = vector.broadcast %65 : vector<1x1xf32> to vector<8x128xf32>
    %67 = arith.mulf %57, %66 : vector<8x128xf32>
    %c0_30 = arith.constant 0 : index
    %c0_31 = arith.constant 0 : index
    %68 = vector.load %arg5[%c0_30, %c0_31] : memref<8x128xf32, #tpu.memory_space<vmem>>, vector<8x128xf32>
    tpu.vector_store %arg5[%c0_30, %c0_31], %67 {strides = array<i32>} : memref<8x128xf32, #tpu.memory_space<vmem>>, vector<8x128xf32>,
    return
  }
}

</mosaic_0001>

<llo_original>
// kernel: tpu_custom_call.1
$region0: #{tpu_custom_call.1}
  #allocation0 [shape = 'u32[]', space=smem, size = 0x4, offset = 0x4, fixed_abs, tag = 'smem constant byte address 0x4 - core index']
  #allocation1 [shape = 'u32[144,128]{1,0:T(1,128)}', space=vmem, size = 0x12000, scoped, tag = 'internal scratch']
  %s0 = inlined_call_operand.hbm [shape: bf16[8,16], index: 0, kind: input, shape index: {}]
  %s1 = inlined_call_operand.hbm [shape: bf16[16,32], index: 1, kind: input, shape index: {}]
  %s2 = inlined_call_operand.hbm [shape: bf16[32,32], index: 2, kind: input, shape index: {}]
  %s3 = inlined_call_operand.hbm [shape: bf16[32,128], index: 3, kind: input, shape index: {}]
  %s4 = inlined_call_operand.vmem [shape: f32[8,128], index: 4, kind: input, shape index: {}]
  %s5 = inlined_call_operand.hbm [shape: f32[8,128], index: 5, kind: output, shape index: {}]
  %s6 = sld [smem:[#allocation0]]
  $region46: #{tpu_custom_call.1} parent=0
    _
  %s8 = ssub.s32 1, %s6
  %s9 = scalar_select 0, %s8, %s6
  $region1: #{tpu_custom_call.1} parent=0
    #allocation2 [shape = 'u8[2048]{0}', space=vmem, size = 0x800, scoped, tag = 'input window, operand 0, single buffered']
    #allocation3 [shape = 's32[1]{0}', space=sflag, size = 0x4, scoped, tag = 'scoped memory for tpu_custom_call.1']
    #allocation4 [shape = 's32[1]{0}', space=sflag, size = 0x4, scoped, tag = 'scoped memory for tpu_custom_call.1']
    #allocation5 [shape = 'u8[4096]{0}', space=vmem, size = 0x1000, scoped, tag = 'input window, operand 1, single buffered']
    #allocation6 [shape = 's32[1]{0}', space=sflag, size = 0x4, scoped, tag = 'scoped memory for tpu_custom_call.1']
    #allocation7 [shape = 'u8[8192]{0}', space=vmem, size = 0x2000, scoped, tag = 'input window, operand 2, single buffered']
    #allocation8 [shape = 'u8[8192]{0}', space=vmem, size = 0x2000, scoped, tag = 'input window, operand 3, single buffered']
    #allocation9 [shape = 's32[1]{0}', space=sflag, size = 0x4, scoped, tag = 'scoped memory for tpu_custom_call.1']
    #allocation10 [shape = 'u8[4096]{0}', space=vmem, size = 0x1000, scoped, tag = 'output window, operand 0, single buffered']
    %10 = vsyncpa [#allocation3], 0
    %11 = vsyncpa [#allocation6], 0
    %12 = vsyncpa [#allocation9], 0
    %13 = vsyncpa [#allocation4], 0
    // Predicated region
    $region2: #{tpu_custom_call.1} parent=1 // pred_check
      _
    $region3: #{tpu_custom_call.1} parent=1 // pred_check_branch
      %15 = sbr.rel (0) target = $region5
    $region4: #{tpu_custom_call.1} parent=1 // pred_region
      %s17 = ssub.s32 64, 64
      %18 = vsyncadd [#allocation3], %s17
      %s20 = sshll.u32 [#allocation2], 4
      %s21 = int_to_ptr.vmem [resolvable:$true] %s20
      %23 = dma.hbm_to_vmem [thread:$0]  %s0, 64, %s21, [#allocation3]
    $region5: #{tpu_custom_call.1} parent=1 // pred_fallthru
      _
    // Predicated region
    $region6: #{tpu_custom_call.1} parent=1 // pred_check
      _
    $region7: #{tpu_custom_call.1} parent=1 // pred_check_branch
      %25 = sbr.rel (0) target = $region9
    $region8: #{tpu_custom_call.1} parent=1 // pred_region
      %s27 = ssub.s32 128, 128
      %28 = vsyncadd [#allocation6], %s27
      %s29 = sshll.u32 [#allocation5], 4
      %s30 = int_to_ptr.vmem [resolvable:$true] %s29
      %35 = dma.hbm_to_vmem [thread:$0]  %s1, 128, %s30, [#allocation6], 64, 64, 4
    $region9: #{tpu_custom_call.1} parent=1 // pred_fallthru
      _
    // Predicated region
    $region10: #{tpu_custom_call.1} parent=1 // pred_check
      _
    $region11: #{tpu_custom_call.1} parent=1 // pred_check_branch
      %37 = sbr.rel (0) target = $region13
    $region12: #{tpu_custom_call.1} parent=1 // pred_region
      %s39 = ssub.s32 256, 256
      %40 = vsyncadd [#allocation6], %s39
      %s41 = sshll.u32 [#allocation7], 4
      %s42 = int_to_ptr.vmem [resolvable:$true] %s41
      %47 = dma.hbm_to_vmem [thread:$0]  %s2, 256, %s42, [#allocation6], 64, 64, 4
    $region13: #{tpu_custom_call.1} parent=1 // pred_fallthru
      _
    // Predicated region
    $region14: #{tpu_custom_call.1} parent=1 // pred_check
      _
    $region15: #{tpu_custom_call.1} parent=1 // pred_check_branch
      %49 = sbr.rel (0) target = $region17
    $region16: #{tpu_custom_call.1} parent=1 // pred_region
      %s51 = ssub.s32 256, 256
      %52 = vsyncadd [#allocation9], %s51
      %s53 = sshll.u32 [#allocation8], 4
      %s54 = int_to_ptr.vmem [resolvable:$true] %s53
      %59 = dma.hbm_to_vmem [thread:$0]  %s3, 256, %s54, [#allocation9], 64, 64, 4
    $region17: #{tpu_custom_call.1} parent=1 // pred_fallthru
      _
    // Predicated region
    $region18: #{tpu_custom_call.1} parent=1 // pred_check
      _
    $region19: #{tpu_custom_call.1} parent=1 // pred_check_branch
      %61 = sbr.rel (0) target = $region21
    $region20: #{tpu_custom_call.1} parent=1 // pred_region
      _
    $region21: #{tpu_custom_call.1} parent=1 // pred_fallthru
      _
    // Predicated region
    $region22: #{tpu_custom_call.1} parent=1 // pred_check
      _
    $region23: #{tpu_custom_call.1} parent=1 // pred_check_branch
      %63 = sbr.rel (0) target = $region25
    $region24: #{tpu_custom_call.1} parent=1 // pred_region
      %64 = dma.done [#allocation3], 64
    $region25: #{tpu_custom_call.1} parent=1 // pred_fallthru
      _
    // Predicated region
    $region26: #{tpu_custom_call.1} parent=1 // pred_check
      _
    $region27: #{tpu_custom_call.1} parent=1 // pred_check_branch
      %66 = sbr.rel (0) target = $region29
    $region28: #{tpu_custom_call.1} parent=1 // pred_region
      %67 = dma.done [#allocation6], 128
    $region29: #{tpu_custom_call.1} parent=1 // pred_fallthru
      _
    // Predicated region
    $region30: #{tpu_custom_call.1} parent=1 // pred_check
      _
    $region31: #{tpu_custom_call.1} parent=1 // pred_check_branch
      %69 = sbr.rel (0) target = $region33
    $region32: #{tpu_custom_call.1} parent=1 // pred_region
      %70 = dma.done [#allocation6], 256
    $region33: #{tpu_custom_call.1} parent=1 // pred_fallthru
      _
    // Predicated region
    $region34: #{tpu_custom_call.1} parent=1 // pred_check
      _
    $region35: #{tpu_custom_call.1} parent=1 // pred_check_branch
      %72 = sbr.rel (0) target = $region37
    $region36: #{tpu_custom_call.1} parent=1 // pred_region
      %73 = dma.done [#allocation9], 256
    $region37: #{tpu_custom_call.1} parent=1 // pred_fallthru
      _
    %v75 = vld [vmem:[%s4] sm:$0x1]
    %v76 = vld [vmem:[%s4 + $0x1] sm:$0x1]
    %v77 = vld [vmem:[%s4 + $0x2] sm:$0x1]
    %v78 = vld [vmem:[%s4 + $0x3] sm:$0x1]
    %v79 = vld [vmem:[%s4 + $0x4] sm:$0x1]
    %v80 = vld [vmem:[#allocation2] sm:$0xf]
    %v81 = vld [vmem:[#allocation5] sm:$0xf]
    %v82 = vld [vmem:[#allocation5 + $0x4] sm:$0xf]
    %v85 = vunpack.c.l.b16 %v81
    %v86 = vunpack.c.l.b16 %v82
    %v87 = vpack.c.b16 %v86, %v85
    %vm89 = vcmask 130048
    %v91 = vsel %vm89, %v80, 0
    %93 = vmatprep.subr.bf16.mxu0 0
    %94 = vmatpush1.bf16.msra.mxu0 %v87
    %95 = vmatprep.subr.bf16.mxu0 0
    %96 = vmatpush1.bf16.msra.mxu0 0
    %97 = vmatprep.subr.bf16.mxu0 0
    %98 = vmatpush1.bf16.msra.mxu0 0
    %99 = vmatprep.subr.bf16.mxu0 0
    %100 = vmatpush1.bf16.msra.mxu0 0
    %101 = vmatprep.subr.bf16.mxu0 0
    %102 = vmatpush1.bf16.msra.mxu0 0
    %103 = vmatprep.subr.bf16.mxu0 0
    %104 = vmatpush1.bf16.msra.mxu0 0
    %105 = vmatprep.subr.bf16.mxu0 0
    %106 = vmatpush1.bf16.msra.mxu0 0
    %107 = vmatprep.subr.bf16.mxu0 0
    %108 = vmatpush1.bf16.msra.mxu0 0
    %109 = vmatprep.subr.bf16.mxu0 0
    %110 = vmatpush1.bf16.msra.mxu0 0
    %111 = vmatprep.subr.bf16.mxu0 0
    %112 = vmatpush1.bf16.msra.mxu0 0
    %113 = vmatprep.subr.bf16.mxu0 0
    %114 = vmatpush1.bf16.msra.mxu0 0
    %115 = vmatprep.subr.bf16.mxu0 0
    %116 = vmatpush1.bf16.msra.mxu0 0
    %117 = vmatprep.subr.bf16.mxu0 0
    %118 = vmatpush1.bf16.msra.mxu0 0
    %119 = vmatprep.subr.bf16.mxu0 0
    %120 = vmatpush1.bf16.msra.mxu0 0
    %121 = vmatprep.subr.bf16.mxu0 0
    %122 = vmatpush1.bf16.msra.mxu0 0
    %123 = vmatprep.subr.bf16.mxu0 0
    %124 = vmatpush1.bf16.msra.mxu0 0
    %125 = vmatprep.mubr.bf16.mxu0 0
    %126 = vmatmul.mubr.bf16.gmra.mrb[0].mxu0 %v91
    %v127 = vpop.f32.mrb[0].mxu0
    %v128 = vadd.f32 0.0, %v127
    %v129 = vpop.f32.mrb[0].mxu0
    %v130 = vpop.f32.mrb[0].mxu0
    %v131 = vpop.f32.mrb[0].mxu0
    %132 = vdwg.mxu0
    %vm133 = vcmask 261120
    %v134 = vsel %vm133, %v128, 0.0
    %v135 = vrot.slane %v134, 4
    %v136 = vadd.f32 %v134, %v135
    %v137 = vrot.slane %v136, 2
    %v138 = vadd.f32 %v136, %v137
    %v139 = vrot.slane %v138, 1
    %v140 = vadd.f32 %v138, %v139
    %v141 = vrcp.pop 8.0
    %v142 = vmul.f32 %v140, %v141
    %v143 = vsub.f32 %v128, %v142
    %v144 = vmul.f32 %v143, %v143
    %v145 = vsel %vm133, %v144, 0.0
    %v146 = vrot.slane %v145, 4
    %v147 = vadd.f32 %v145, %v146
    %v148 = vrot.slane %v147, 2
    %v149 = vadd.f32 %v147, %v148
    %v150 = vrot.slane %v149, 1
    %v151 = vadd.f32 %v149, %v150
    %v152 = vmul.f32 %v151, %v141
    %v153 = vadd.f32 %v152, 1e-05
    %v154 = vrsqrt.pop %v153
    %v155 = vmul.f32 %v75, %v154
    %v156 = vlaneseq
    %v157 = vshrl.u32 %v156, 7
    %v158 = vsub.s32 0, %v157
    %v159 = vrot.slane %v155, %v158
    %v160 = vmul.f32 %v143, %v159
    %v161 = vlaneseq
    %v162 = vshrl.u32 %v161, 7
    %v163 = vsub.s32 0, %v162
    %v164 = vrot.slane %v76, %v163
    %v165 = vadd.f32 %v160, %v164
    %v166 = vmax.f32 %v165, 0.0
    %v167 = vpack.c.bf16 %v166, %v166
    %v168 = vld [vmem:[#allocation7] sm:$0xf]
    %v169 = vld [vmem:[#allocation7 + $0x4] sm:$0xf]
    %v170 = vld [vmem:[#allocation7 + $0x8] sm:$0xf]
    %v171 = vld [vmem:[#allocation7 + $0xc] sm:$0xf]
    %v176 = vunpack.c.l.b16 %v168
    %v177 = vunpack.c.l.b16 %v169
    %v178 = vunpack.c.l.b16 %v170
    %v179 = vunpack.c.l.b16 %v171
    %v180 = vpack.c.b16 %v177, %v176
    %v181 = vpack.c.b16 %v179, %v178
    %v185 = vsel %vm133, %v167, 0
    %187 = vmatprep.subr.bf16.mxu0 0
    %188 = vmatpush1.bf16.msra.mxu0 %v180
    %189 = vmatprep.subr.bf16.mxu0 0
    %190 = vmatpush1.bf16.msra.mxu0 %v181
    %191 = vmatprep.subr.bf16.mxu0 0
    %192 = vmatpush1.bf16.msra.mxu0 0
    %193 = vmatprep.subr.bf16.mxu0 0
    %194 = vmatpush1.bf16.msra.mxu0 0
    %195 = vmatprep.subr.bf16.mxu0 0
    %196 = vmatpush1.bf16.msra.mxu0 0
    %197 = vmatprep.subr.bf16.mxu0 0
    %198 = vmatpush1.bf16.msra.mxu0 0
    %199 = vmatprep.subr.bf16.mxu0 0
    %200 = vmatpush1.bf16.msra.mxu0 0
    %201 = vmatprep.subr.bf16.mxu0 0
    %202 = vmatpush1.bf16.msra.mxu0 0
    %203 = vmatprep.subr.bf16.mxu0 0
    %204 = vmatpush1.bf16.msra.mxu0 0
    %205 = vmatprep.subr.bf16.mxu0 0
    %206 = vmatpush1.bf16.msra.mxu0 0
    %207 = vmatprep.subr.bf16.mxu0 0
    %208 = vmatpush1.bf16.msra.mxu0 0
    %209 = vmatprep.subr.bf16.mxu0 0
    %210 = vmatpush1.bf16.msra.mxu0 0
    %211 = vmatprep.subr.bf16.mxu0 0
    %212 = vmatpush1.bf16.msra.mxu0 0
    %213 = vmatprep.subr.bf16.mxu0 0
    %214 = vmatpush1.bf16.msra.mxu0 0
    %215 = vmatprep.subr.bf16.mxu0 0
    %216 = vmatpush1.bf16.msra.mxu0 0
    %217 = vmatprep.subr.bf16.mxu0 0
    %218 = vmatpush1.bf16.msra.mxu0 0
    %219 = vmatprep.mubr.bf16.mxu0 0
    %220 = vmatmul.mubr.bf16.gmra.mrb[0].mxu0 %v185
    %v221 = vpop.f32.mrb[0].mxu0
    %v222 = vadd.f32 0.0, %v221
    %v223 = vpop.f32.mrb[0].mxu0
    %v224 = vpop.f32.mrb[0].mxu0
    %v225 = vpop.f32.mrb[0].mxu0
    %226 = vdwg.mxu0
    %v227 = vsel %vm133, %v222, 0.0
    %v228 = vrot.slane %v227, 4
    %v229 = vadd.f32 %v227, %v228
    %v230 = vrot.slane %v229, 2
    %v231 = vadd.f32 %v229, %v230
    %v232 = vrot.slane %v231, 1
    %v233 = vadd.f32 %v231, %v232
    %v234 = vmul.f32 %v233, %v141
    %v235 = vsub.f32 %v222, %v234
    %v236 = vmul.f32 %v235, %v235
    %v237 = vsel %vm133, %v236, 0.0
    %v238 = vrot.slane %v237, 4
    %v239 = vadd.f32 %v237, %v238
    %v240 = vrot.slane %v239, 2
    %v241 = vadd.f32 %v239, %v240
    %v242 = vrot.slane %v241, 1
    %v243 = vadd.f32 %v241, %v242
    %v244 = vmul.f32 %v243, %v141
    %v245 = vadd.f32 %v244, 1e-05
    %v246 = vrsqrt.pop %v245
    %v247 = vmul.f32 %v77, %v246
    %v248 = vlaneseq
    %v249 = vshrl.u32 %v248, 7
    %v250 = vsub.s32 0, %v249
    %v251 = vrot.slane %v247, %v250
    %v252 = vmul.f32 %v235, %v251
    %v253 = vlaneseq
    %v254 = vshrl.u32 %v253, 7
    %v255 = vsub.s32 0, %v254
    %v256 = vrot.slane %v78, %v255
    %v257 = vadd.f32 %v252, %v256
    %v258 = vmax.f32 %v257, 0.0
    %v259 = vpack.c.bf16 %v258, %v258
    %v260 = vld [vmem:[#allocation8] sm:$0xf]
    %v261 = vld [vmem:[#allocation8 + $0x4] sm:$0xf]
    %v262 = vld [vmem:[#allocation8 + $0x8] sm:$0xf]
    %v263 = vld [vmem:[#allocation8 + $0xc] sm:$0xf]
    %v264 = vlaneseq
    %v265 = vshrl.u32 %v264, 7
    %v266 = vsub.s32 0, %v265
    %v267 = vrot.slane %v79, %v266
    %v272 = vunpack.c.l.b16 %v260
    %v273 = vunpack.c.l.b16 %v261
    %v274 = vunpack.c.l.b16 %v262
    %v275 = vunpack.c.l.b16 %v263
    %v276 = vpack.c.b16 %v273, %v272
    %v277 = vpack.c.b16 %v275, %v274
    %v281 = vsel %vm133, %v259, 0
    %283 = vmatprep.subr.bf16.mxu0 0
    %284 = vmatpush1.bf16.msra.mxu0 %v276
    %285 = vmatprep.subr.bf16.mxu0 0
    %286 = vmatpush1.bf16.msra.mxu0 %v277
    %287 = vmatprep.subr.bf16.mxu0 0
    %288 = vmatpush1.bf16.msra.mxu0 0
    %289 = vmatprep.subr.bf16.mxu0 0
    %290 = vmatpush1.bf16.msra.mxu0 0
    %291 = vmatprep.subr.bf16.mxu0 0
    %292 = vmatpush1.bf16.msra.mxu0 0
    %293 = vmatprep.subr.bf16.mxu0 0
    %294 = vmatpush1.bf16.msra.mxu0 0
    %295 = vmatprep.subr.bf16.mxu0 0
    %296 = vmatpush1.bf16.msra.mxu0 0
    %297 = vmatprep.subr.bf16.mxu0 0
    %298 = vmatpush1.bf16.msra.mxu0 0
    %299 = vmatprep.subr.bf16.mxu0 0
    %300 = vmatpush1.bf16.msra.mxu0 0
    %301 = vmatprep.subr.bf16.mxu0 0
    %302 = vmatpush1.bf16.msra.mxu0 0
    %303 = vmatprep.subr.bf16.mxu0 0
    %304 = vmatpush1.bf16.msra.mxu0 0
    %305 = vmatprep.subr.bf16.mxu0 0
    %306 = vmatpush1.bf16.msra.mxu0 0
    %307 = vmatprep.subr.bf16.mxu0 0
    %308 = vmatpush1.bf16.msra.mxu0 0
    %309 = vmatprep.subr.bf16.mxu0 0
    %310 = vmatpush1.bf16.msra.mxu0 0
    %311 = vmatprep.subr.bf16.mxu0 0
    %312 = vmatpush1.bf16.msra.mxu0 0
    %313 = vmatprep.subr.bf16.mxu0 0
    %314 = vmatpush1.bf16.msra.mxu0 0
    %315 = vmatprep.mubr.bf16.mxu0 0
    %316 = vmatmul.mubr.bf16.gmra.mrb[0].mxu0 %v281
    %v317 = vpop.f32.mrb[0].mxu0
    %v318 = vadd.f32 %v267, %v317
    %v319 = vpop.f32.mrb[0].mxu0
    %v320 = vpop.f32.mrb[0].mxu0
    %v321 = vpop.f32.mrb[0].mxu0
    %322 = vdwg.mxu0
    %v323 = vand.u32 2147483647, %v318
    %v324 = vrot.slane %v323, 4
    %v325 = vadd.f32 %v323, %v324
    %v326 = vrot.slane %v325, 2
    %v327 = vadd.f32 %v325, %v326
    %v328 = vrot.slane %v327, 1
    %v329 = vadd.f32 %v327, %v328
    %330 = vmax.xlane.f32.xlu0 %v329
    %v331 = vpop.xlane.xlu0 %330
    %v332 = vmax.f32 %v331, 1e-30
    %v333 = vrcp.pop %v332
    %v334 = vmul.f32 %v318, %v333
    %335 = vst [vmem:[#allocation10] sm:$0xff] %v334
    // Predicated region
    $region38: #{tpu_custom_call.1} parent=1 // pred_check
      _
    $region39: #{tpu_custom_call.1} parent=1 // pred_check_branch
      %337 = sbr.rel (0) target = $region41
    $region40: #{tpu_custom_call.1} parent=1 // pred_region
      %s339 = ssub.s32 128, 128
      %340 = vsyncadd [#allocation4], %s339
      %s342 = sshll.u32 [#allocation10], 4
      %s343 = int_to_ptr.vmem [resolvable:$true] %s342
      %345 = dma.vmem_to_hbm [thread:$0]  %s343, 128, %s5, [#allocation4]
    $region41: #{tpu_custom_call.1} parent=1 // pred_fallthru
      _
    // Predicated region
    $region42: #{tpu_custom_call.1} parent=1 // pred_check
      _
    $region43: #{tpu_custom_call.1} parent=1 // pred_check_branch
      %347 = sbr.rel (0) target = $region45
    $region44: #{tpu_custom_call.1} parent=1 // pred_region
      %348 = dma.done [#allocation4], 128
    $region45: #{tpu_custom_call.1} parent=1 // pred_fallthru
      _
    %349 = vsyncpa [#allocation3], 1
    %350 = vsyncpa [#allocation6], 1
    %351 = vsyncpa [#allocation9], 1
    %352 = vsyncpa [#allocation4], 1

</llo_original>
